<compile_context>
chip_gen: v5e
topology: v5e:2x2
jax: 0.10.0
libtpu: 0.0.40
codegen_flags: <defaults>
</compile_context>

<pallas_src>
import jax
import jax.numpy as jnp
from jax.experimental import pallas as pl
from jax.experimental.pallas import tpu as pltpu

_LANE = 128
_SUBLANE = 8


def _conv1x1x1_kernel(x_ref, w_ref, b_ref, o_ref):
    # x_ref: (C_in, TS)        activation tile, flattened spatial on lanes
    # w_ref: (C_out_p, C_in)   PyTorch-native weight layout, resident in VMEM
    # b_ref: (C_out_p, TS) or (C_out_p, 1)  bias (lane-replicated when cheap)
    # o_ref: (C_out_p, TS)     lane-dense output tile
    acc = jnp.dot(w_ref[...], x_ref[...], preferred_element_type=jnp.float32)
    o_ref[...] = (acc + b_ref[...]).astype(o_ref.dtype)


def _cdiv(a, b):
    return -(-a // b)


def _round_down_lane(x):
    return (x // _LANE) * _LANE


def _device_kind():
    try:
        return jax.devices()[0].device_kind.lower()
    except Exception:
        return ""


def _hbm_bytes_per_sec():
    """Rough per-TensorCore HBM bandwidth by generation (tile sizing only)."""
    kind = _device_kind()
    if "v7" in kind or "7x" in kind:
        return 3.2e12
    if "v6" in kind:
        return 1.4e12
    if "v5" in kind:
        return 0.82e12
    return 1.4e12


def _tensorcores_per_device():
    """TensorCores one pallas_call can be sharded over via megacore."""
    kind = _device_kind()
    if "v5 lite" in kind or "v5e" in kind or "v6" in kind:
        return 1          # v5e / v6e: single TensorCore per chip
    return 2              # v4 / v5p megacore, v7x: two TensorCores


def _pick_spatial_tile(S, C_in, C_out_p, N):
    """Lane-dense spatial tile, sized so DMA per step >> per-step overhead."""
    bpl = (C_in + C_out_p) * 4                       # HBM bytes per lane (in+out, f32)

    # (a) bandwidth-aware target: >= ~2.5 us of DMA per grid step.
    bw_lanes = int(_hbm_bytes_per_sec() * 2.5e-6) // bpl
    # (b) floor of 64K lanes (review), (c) VMEM ceiling: double-buffered
    #     in+out tiles within ~32 MiB, (d) hard cap 256K lanes.
    target = max(bw_lanes, 65536)
    vmem_lanes = (32 << 20) // (2 * bpl)
    ts = min(target, vmem_lanes, 262144)
    ts = max(_LANE, _round_down_lane(ts))

    if ts >= S:
        ts = S                                       # whole spatial axis in one block

    # Multi-TC load balance: want >= 2 blocks per TensorCore when the grid
    # would otherwise collapse to just 1-2 blocks.
    min_blocks = 2 * _tensorcores_per_device()
    if N * _cdiv(S, ts) < min_blocks and S >= 2 * _LANE:
        per_batch = _cdiv(min_blocks, N)
        ts = max(_LANE, _round_down_lane(S // per_batch))

    # Prefer a tile that divides S exactly (kills the masked ragged-tail
    # block) as long as it does not shrink the tile by more than 2x.
    if 0 < ts < S and S % ts != 0 and ts % _LANE == 0:
        lo = max(_LANE, _round_down_lane(ts // 2))
        cand = ts
        while cand >= lo:
            if S % cand == 0:
                ts = cand
                break
            cand -= _LANE
    return ts


def compress_features(x_ncdhw, weight, bias):
    """1x1x1 Conv3d forward (CompressFeatures.forward).

    x_ncdhw: (N, C_in, D, H, W) float32
    weight:  (C_out, C_in, 1, 1, 1) float32   (PyTorch Conv3d weight layout)
    bias:    (C_out,) float32
    returns: (N, C_out, D, H, W) float32
    """
    N, C_in, D, H, W = x_ncdhw.shape
    C_out = weight.shape[0]
    S = D * H * W

    # Zero-cost reshapes: channels-first is already the memory layout.
    x = x_ncdhw.reshape(N, C_in, S)              # (N, C_in, S), S on lanes
    w = weight.reshape(C_out, C_in)              # native layout, no transpose
    b = bias.reshape(C_out, 1)

    # Pad C_out to a multiple of 8 (f32 sublanes) so output stores are full
    # vregs (no vst.msk).  No-op when C_out is already a multiple of 8.
    C_out_p = _cdiv(C_out, _SUBLANE) * _SUBLANE
    if C_out_p != C_out:
        w = jnp.pad(w, ((0, C_out_p - C_out), (0, 0)))
        b = jnp.pad(b, ((0, C_out_p - C_out), (0, 0)))

    ts = _pick_spatial_tile(S, C_in, C_out_p, N)
    grid = (N, _cdiv(S, ts))

    # Bias: hoist a lane-replicated copy when it is cheap (<= 2 MiB resident),
    # so the per-step epilogue is a pure lane-wise VPU add with no in-kernel
    # lane broadcast.  Falls back to (C_out_p, 1) + broadcast for large C_out
    # (the add is hidden under DMA either way -- kernel is HBM-bound).
    if C_out_p * ts * 4 <= (2 << 20):
        b_arr = jnp.broadcast_to(b, (C_out_p, ts))
        b_spec = pl.BlockSpec((C_out_p, ts), lambda n, s: (0, 0))
    else:
        b_arr = b
        b_spec = pl.BlockSpec((C_out_p, 1), lambda n, s: (0, 0))

    # Scoped-VMEM limit: cover double-buffered tiles + resident consts with
    # headroom; defaults (16 MiB on v5e) would otherwise cap the larger tile.
    # Kept <= 56 MiB so it always fits v7x's 64 MiB physical VMEM.
    tile_bytes = 2 * (C_in + C_out_p) * ts * 4
    const_bytes = C_out_p * C_in * 4 + int(b_arr.size) * 4
    vmem_limit = int(min(max(tile_bytes + const_bytes + (8 << 20), 32 << 20), 56 << 20))

    out = pl.pallas_call(
        _conv1x1x1_kernel,
        out_shape=jax.ShapeDtypeStruct((N, C_out_p, S), x.dtype),
        grid_spec=pl.GridSpec(
            grid=grid,
            in_specs=[
                # N dim squeezed; (C_in, ts) block: C_in full dim, ts lane-dense.
                pl.BlockSpec((None, C_in, ts), lambda n, s: (n, 0, s)),
                # Weight / bias: constant index_map -> resident in VMEM.
                pl.BlockSpec((C_out_p, C_in), lambda n, s: (0, 0)),
                b_spec,
            ],
            out_specs=pl.BlockSpec((None, C_out_p, ts), lambda n, s: (n, 0, s)),
        ),
        compiler_params=pltpu.CompilerParams(
            # Both grid axes independent -> shard across megacore / v7x 2 TCs.
            dimension_semantics=("parallel", "parallel"),
            vmem_limit_bytes=vmem_limit,
        ),
    )(x, w, b_arr)

    if C_out_p != C_out:
        out = out[:, :C_out, :]
    return out.reshape(N, C_out, D, H, W)        # zero-cost reshape back to NCDHW


def reference_conv1x1x1(x_ncdhw, weight, bias):
    # Pure-JAX reference: einsum over channels.
    w = weight.reshape(weight.shape[0], weight.shape[1])  # (C_out, C_in)
    y = jnp.einsum("ncdhw,oc->nodhw", x_ncdhw, w)
    return y + bias[None, :, None, None, None]


if __name__ == "__main__":
    key = jax.random.PRNGKey(0)
    k_x, k_w, k_b = jax.random.split(key, 3)

    # Small shapes consistent with Conv3d(channels_in=4, channels_out=8, k=1).
    N, C_in, D, H, W = 2, 4, 8, 8, 8
    C_out = 8

    x = jax.random.normal(k_x, (N, C_in, D, H, W), dtype=jnp.float32)
    weight = jax.random.normal(k_w, (C_out, C_in, 1, 1, 1), dtype=jnp.float32) / jnp.sqrt(
        jnp.float32(C_in))
    bias = jax.random.normal(k_b, (C_out,), dtype=jnp.float32) * 0.01

    y = jax.block_until_ready(compress_features(x, weight, bias))

    y_ref = reference_conv1x1x1(x, weight, bias)
    assert y.shape == (N, C_out, D, H, W), y.shape
    max_err = float(jnp.max(jnp.abs(y - y_ref)))
    assert max_err < 1e-4, max_err

    print("KERNEL_OK")
</pallas_src>

<mosaic_0001>
module attributes {stable_mosaic.version = 11 : i64} {
  func.func @_conv1x1x1_kernel(%arg0: i32, %arg1: i32, %arg2: memref<1x4x256xf32, #tpu.memory_space<vmem>>, %arg3: memref<8x4xf32, #tpu.memory_space<vmem>>, %arg4: memref<8x256xf32, #tpu.memory_space<vmem>>, %arg5: memref<1x8x256xf32, #tpu.memory_space<vmem>>) attributes {dimension_semantics = [#tpu.dimension_semantics<parallel>, #tpu.dimension_semantics<parallel>], iteration_bounds = array<i64: 2, 2>, scalar_prefetch = 0 : i64, scratch_operands = 0 : i64, tpu.core_type = #tpu.core_type<tc>, window_params = [{transform_indices = @transform_0, window_bounds = array<i64: 1, 4, 256>}, {pipeline_mode = #tpu.pipeline_mode<synchronous>, transform_indices = @transform_1, window_bounds = array<i64: 8, 4>}, {pipeline_mode = #tpu.pipeline_mode<synchronous>, transform_indices = @transform_2, window_bounds = array<i64: 8, 256>}, {transform_indices = @transform_3, window_bounds = array<i64: 1, 8, 256>}]} {
    %c0 = arith.constant 0 : index
    %c0_0 = arith.constant 0 : index
    %0 = vector.load %arg3[%c0, %c0_0] : memref<8x4xf32, #tpu.memory_space<vmem>>, vector<8x4xf32>
    %c0_1 = arith.constant 0 : index
    %c0_2 = arith.constant 0 : index
    %c0_3 = arith.constant 0 : index
    %1 = vector.load %arg2[%c0_1, %c0_2, %c0_3] : memref<1x4x256xf32, #tpu.memory_space<vmem>>, vector<1x4x256xf32>
    %2 = vector.shape_cast %1 : vector<1x4x256xf32> to vector<4x256xf32>
    %cst = arith.constant dense<0.000000e+00> : vector<8x256xf32>
    %3 = tpu.matmul %0, %2, %cst {dimension_numbers = #tpu.dot_dimension_numbers<[1], [0], [0], [1], [0, 0, 1, 1], [], []>} : vector<8x4xf32>, vector<4x256xf32>, vector<8x256xf32> -> vector<8x256xf32>
    %c0_4 = arith.constant 0 : index
    %c0_5 = arith.constant 0 : index
    %4 = vector.load %arg4[%c0_4, %c0_5] : memref<8x256xf32, #tpu.memory_space<vmem>>, vector<8x256xf32>
    %5 = arith.addf %3, %4 : vector<8x256xf32>
    %c0_6 = arith.constant 0 : index
    %c0_7 = arith.constant 0 : index
    %c0_8 = arith.constant 0 : index
    %6 = vector.load %arg5[%c0_6, %c0_7, %c0_8] : memref<1x8x256xf32, #tpu.memory_space<vmem>>, vector<1x8x256xf32>
    %7 = vector.shape_cast %6 : vector<1x8x256xf32> to vector<8x256xf32>
    %8 = vector.shape_cast %5 : vector<8x256xf32> to vector<1x8x256xf32>
    tpu.vector_store %arg5[%c0_6, %c0_7, %c0_8], %8 {strides = array<i32>} : memref<1x8x256xf32, #tpu.memory_space<vmem>>, vector<1x8x256xf32>,
    return
  }
  func.func @transform_0(%arg0: i32, %arg1: i32) -> (i32, i32, i32) {
    %c0_i32 = arith.constant 0 : i32
    %c0_i32_0 = arith.constant 0 : i32
    return %arg0, %c0_i32, %arg1 : i32, i32, i32
  }
  func.func @transform_1(%arg0: i32, %arg1: i32) -> (i32, i32) {
    %c0_i32 = arith.constant 0 : i32
    %c0_i32_0 = arith.constant 0 : i32
    %c0_i32_1 = arith.constant 0 : i32
    return %c0_i32, %c0_i32_0 : i32, i32
  }
  func.func @transform_2(%arg0: i32, %arg1: i32) -> (i32, i32) {
    %c0_i32 = arith.constant 0 : i32
    %c0_i32_0 = arith.constant 0 : i32
    %c0_i32_1 = arith.constant 0 : i32
    return %c0_i32, %c0_i32_0 : i32, i32
  }
  func.func @transform_3(%arg0: i32, %arg1: i32) -> (i32, i32, i32) {
    %c0_i32 = arith.constant 0 : i32
    %c0_i32_0 = arith.constant 0 : i32
    return %arg0, %c0_i32, %arg1 : i32, i32, i32
  }
}

</mosaic_0001>

<llo_original>
// kernel: tpu_custom_call.1
$region0: #{tpu_custom_call.1}
  #allocation0 [shape = 'u32[]', space=smem, size = 0x4, offset = 0x4, fixed_abs, tag = 'smem constant byte address 0x4 - core index']
  #allocation1 [shape = 'u32[72,128]{1,0:T(1,128)}', space=vmem, size = 0x9000, scoped, tag = 'internal scratch']
  %s0 = inlined_call_operand.hbm [shape: f32[2,4,512], index: 0, kind: input, shape index: {}]
  %s1 = inlined_call_operand.vmem [shape: f32[8,4], index: 1, kind: input, shape index: {}]
  %s2 = inlined_call_operand.hbm [shape: f32[8,256], index: 2, kind: input, shape index: {}]
  %s3 = inlined_call_operand.hbm [shape: f32[2,8,512], index: 3, kind: output, shape index: {}]
  %s4 = sld [smem:[#allocation0]]
  $region53: #{tpu_custom_call.1} parent=0
    _
  %s6 = ssub.s32 1, %s4
  %s7 = scalar_select 0, %s6, %s4
  $region1: #{tpu_custom_call.1} parent=0
    #allocation2 [shape = 'u8[8192]{0}', space=vmem, size = 0x2000, scoped, tag = 'input window, operand 0']
    #allocation3 [shape = 's32[2]{0}', space=sflag, size = 0x8, scoped, tag = 'scoped memory for tpu_custom_call.1']
    #allocation4 [shape = 's32[2]{0}', space=sflag, size = 0x8, scoped, tag = 'scoped memory for tpu_custom_call.1']
    #allocation5 [shape = 'u8[8192]{0}', space=vmem, size = 0x2000, scoped, tag = 'input window, operand 2, single buffered']
    #allocation6 [shape = 's32[1]{0}', space=sflag, size = 0x4, scoped, tag = 'scoped memory for tpu_custom_call.1']
    #allocation7 [shape = 'u8[16384]{0}', space=vmem, size = 0x4000, scoped, tag = 'output window, operand 0']
    %8 = vsyncpa [#allocation3], 0
    %s9 = scalar_lea.sflag [#allocation3], 1
    %10 = vsyncpa %s9, 0
    %11 = vsyncpa [#allocation6], 0
    %12 = vsyncpa [#allocation4], 0
    %s13 = scalar_lea.sflag [#allocation4], 1
    %14 = vsyncpa %s13, 0
    loop: start=0, step=1, limit=6
    $region2: #{tpu_custom_call.1} parent=1 // loop_pre_header
      _
    $region3: #{tpu_custom_call.1} parent=1 // loop_header
      %s16 = sphi 0, %s20
      %p17 = scmp.ge.s32.totalorder %s16, 6
      %s23 = sphi 0, %s35
      %s24 = sphi 0, %s31
      %s25 = sphi 0, %s23
      %s26 = sphi 0, %s24
      %s27 = sphi 0, %s25
      %s28 = sphi 0, %s26
      %s40 = sphi 0, %s42
      %s43 = sphi 0, %s40
      %s44 = sphi 0, %s43
      %s60 = sphi 0, %s44
      %s64 = sphi 0, %s64
      %s66 = sphi 0, %s64
      %s67 = sphi 0, %s66
      %s81 = sphi 0, %s67
      %s85 = sphi 0, %s85
      %s87 = sphi 0, %s85
      %s88 = sphi 0, %s87
      %s102 = sphi 0, %s88
      %s110 = sphi 0, %s112
      %s113 = sphi 0, %s110
      %s114 = sphi 0, %s113
      %s130 = sphi 0, %s114
    $region4: #{tpu_custom_call.1} parent=1 // loop_header_branch
      %19 = sbr.rel (%p17) target = $region8
    $region5: #{tpu_custom_call.1} parent=1 // loop_body
      %s21 = ssub.s32 %s16, 1
      %s22 = ssub.s32 %s16, 2
      %s29 = sadd.s32 1, %s24
      %p30 = scmp.ge.s32.totalorder %s29, 2
      %s31 = scalar_select %p30, 0, %s29
      %s32 = sadd.s32 1, %s23
      %s33 = scalar_select %p30, %s32, %s23
      %p34 = scmp.ge.s32.totalorder %s33, 2
      %s35 = scalar_select %p34, 0, %s33
      %s36 = ssub.s32 %s23, %s35
      %s37 = ssub.s32 %s24, %s31
      %s38 = sor.u32 %s36, %s37
      %p39 = scmp.eq.s32.totalorder %s38, 0
      %s41 = sadd.s32 %s40, 1
      %s42 = scalar_select %p39, %s40, %s41
      %p45 = pneg %p39
      %p46 = scmp.eq.s32.totalorder %s16, 3
      %p47 = por %p45, %p46
      %p48 = scmp.ne.s32.totalorder %s40, %s43
      %p49 = scmp.eq.s32.totalorder %s16, 0
      %p50 = por %p48, %p49
      %p51 = scmp.ne.s32.totalorder %s40, %s43
      %p52 = scmp.eq.s32.totalorder %s21, 3
      %p53 = por %p51, %p52
      %p54 = scmp.ne.s32.totalorder %s43, %s44
      %p55 = scmp.eq.s32.totalorder %s21, 0
      %p56 = por %p54, %p55
      %p57 = scmp.ne.s32.totalorder %s43, %s44
      %p58 = scmp.eq.s32.totalorder %s22, 3
      %p59 = por %p57, %p58
      %p61 = scmp.ne.s32.totalorder %s44, %s60
      %p62 = scmp.eq.s32.totalorder %s22, 0
      %p63 = por %p61, %p62
      %s65 = sadd.s32 %s64, 1
      %p68 = scmp.eq.s32.totalorder %s16, 3
      %p69 = scmp.ne.s32.totalorder %s64, %s66
      %p70 = scmp.eq.s32.totalorder %s16, 0
      %p71 = por %p69, %p70
      %p72 = scmp.ne.s32.totalorder %s64, %s66
      %p73 = scmp.eq.s32.totalorder %s21, 3
      %p74 = por %p72, %p73
      %p75 = scmp.ne.s32.totalorder %s66, %s67
      %p76 = scmp.eq.s32.totalorder %s21, 0
      %p77 = por %p75, %p76
      %p78 = scmp.ne.s32.totalorder %s66, %s67
      %p79 = scmp.eq.s32.totalorder %s22, 3
      %p80 = por %p78, %p79
      %p82 = scmp.ne.s32.totalorder %s67, %s81
      %p83 = scmp.eq.s32.totalorder %s22, 0
      %p84 = por %p82, %p83
      %s86 = sadd.s32 %s85, 1
      %p89 = scmp.eq.s32.totalorder %s16, 3
      %p90 = scmp.ne.s32.totalorder %s85, %s87
      %p91 = scmp.eq.s32.totalorder %s16, 0
      %p92 = por %p90, %p91
      %p93 = scmp.ne.s32.totalorder %s85, %s87
      %p94 = scmp.eq.s32.totalorder %s21, 3
      %p95 = por %p93, %p94
      %p96 = scmp.ne.s32.totalorder %s87, %s88
      %p97 = scmp.eq.s32.totalorder %s21, 0
      %p98 = por %p96, %p97
      %p99 = scmp.ne.s32.totalorder %s87, %s88
      %p100 = scmp.eq.s32.totalorder %s22, 3
      %p101 = por %p99, %p100
      %p103 = scmp.ne.s32.totalorder %s88, %s102
      %p104 = scmp.eq.s32.totalorder %s22, 0
      %p105 = por %p103, %p104
      %s106 = ssub.s32 %s23, %s35
      %s107 = ssub.s32 %s24, %s31
      %s108 = sor.u32 %s106, %s107
      %p109 = scmp.eq.s32.totalorder %s108, 0
      %s111 = sadd.s32 %s110, 1
      %s112 = scalar_select %p109, %s110, %s111
      %p115 = pneg %p109
      %p116 = scmp.eq.s32.totalorder %s16, 3
      %p117 = por %p115, %p116
      %p118 = scmp.ne.s32.totalorder %s110, %s113
      %p119 = scmp.eq.s32.totalorder %s16, 0
      %p120 = por %p118, %p119
      %p121 = scmp.ne.s32.totalorder %s110, %s113
      %p122 = scmp.eq.s32.totalorder %s21, 3
      %p123 = por %p121, %p122
      %p124 = scmp.ne.s32.totalorder %s113, %s114
      %p125 = scmp.eq.s32.totalorder %s21, 0
      %p126 = por %p124, %p125
      %p127 = scmp.ne.s32.totalorder %s113, %s114
      %p128 = scmp.eq.s32.totalorder %s22, 3
      %p129 = por %p127, %p128
      %p131 = scmp.ne.s32.totalorder %s114, %s130
      %p132 = scmp.eq.s32.totalorder %s22, 0
      %p133 = por %p131, %p132
      %p134 = scmp.le.s32.totalorder 1, %s16
      %p135 = scmp.lt.s32.totalorder %s16, 5
      %p136 = pnand %p134, %p135
      %p137 = pneg %p136
      // Predicated region
      $region9: #{tpu_custom_call.1} parent=5 // pred_check
        _
      $region10: #{tpu_custom_call.1} parent=5 // pred_check_branch
        %139 = sbr.rel (%p136) target = $region12
      $region11: #{tpu_custom_call.1} parent=5 // pred_region
        %s140 = ssub.s32 %s16, 1
        // Predicated region
        $region13: #{tpu_custom_call.1} parent=11 // pred_check
          %p141 = pneg %p77
        $region14: #{tpu_custom_call.1} parent=11 // pred_check_branch
          %143 = sbr.rel (%p141) target = $region16
        $region15: #{tpu_custom_call.1} parent=11 // pred_region
          _
        $region16: #{tpu_custom_call.1} parent=11 // pred_fallthru
          _
        // Predicated region
        $region17: #{tpu_custom_call.1} parent=11 // pred_check
          %p144 = pneg %p98
        $region18: #{tpu_custom_call.1} parent=11 // pred_check_branch
          %146 = sbr.rel (%p144) target = $region20
        $region19: #{tpu_custom_call.1} parent=11 // pred_region
          %148 = vsyncadd [#allocation6], 0
          %s150 = sshll.u32 %s2, 4
          %s151 = int_to_ptr.hbm [resolvable:$true] %s150
          %s152 = sshll.u32 [#allocation5], 4
          %s153 = int_to_ptr.vmem [resolvable:$true] %s152
          %155 = dma.hbm_to_vmem [thread:$0]  %s151, 256, %s153, [#allocation6]
        $region20: #{tpu_custom_call.1} parent=11 // pred_fallthru
          _
      $region12: #{tpu_custom_call.1} parent=5 // pred_fallthru
        _
      %p156 = scmp.lt.s32.totalorder %s16, 4
      // Predicated region
      $region21: #{tpu_custom_call.1} parent=5 // pred_check
        %p157 = pneg %p156
      $region22: #{tpu_custom_call.1} parent=5 // pred_check_branch
        %159 = sbr.rel (%p157) target = $region24
      $region23: #{tpu_custom_call.1} parent=5 // pred_region
        // Predicated region
        $region25: #{tpu_custom_call.1} parent=23 // pred_check
          %p160 = pneg %p50
        $region26: #{tpu_custom_call.1} parent=23 // pred_check_branch
          %162 = sbr.rel (%p160) target = $region28
        $region27: #{tpu_custom_call.1} parent=23 // pred_region
          %s163 = sand.u32 %s40, 1
          %s164 = scalar_lea.sflag [#allocation3], %s163
          %s165 = sand.u32 %s40, 1
          %s166 = smul.addr %s165, 8
          %s167 = scalar_lea.vmem [#allocation2], %s166
          %s168 = smul.u32 2, %s24
          %170 = vsyncadd %s164, 0
          %s171 = smul.addr %s23, 4
          %s172 = sadd.s32 %s168, %s171
          %s173 = smul.addr %s172, 4
          %s174 = scalar_lea.hbm %s0, %s173
          %s176 = sshll.u32 %s174, 4
          %s177 = int_to_ptr.hbm [resolvable:$true] %s176
          %s178 = sshll.u32 %s167, 4
          %s179 = int_to_ptr.vmem [resolvable:$true] %s178
          %181 = dma.hbm_to_vmem [thread:$0]  %s177, 128, %s179, %s164
        $region28: #{tpu_custom_call.1} parent=23 // pred_fallthru
          _
      $region24: #{tpu_custom_call.1} parent=5 // pred_fallthru
        _
      %p182 = scmp.le.s32.totalorder 1, %s16
      %p183 = scmp.lt.s32.totalorder %s16, 5
      %p184 = pnand %p182, %p183
      %p185 = pneg %p184
      // Predicated region
      $region29: #{tpu_custom_call.1} parent=5 // pred_check
        _
      $region30: #{tpu_custom_call.1} parent=5 // pred_check_branch
        %187 = sbr.rel (%p184) target = $region32
      $region31: #{tpu_custom_call.1} parent=5 // pred_region
        %s188 = ssub.s32 %s16, 1
        %s189 = sand.u32 %s43, 1
        %s190 = scalar_lea.sflag [#allocation3], %s189
        %s191 = sand.u32 %s43, 1
        %s192 = smul.addr %s191, 8
        %s193 = scalar_lea.vmem [#allocation2], %s192
        // Predicated region
        $region33: #{tpu_custom_call.1} parent=31 // pred_check
          %p194 = pneg %p56
        $region34: #{tpu_custom_call.1} parent=31 // pred_check_branch
          %196 = sbr.rel (%p194) target = $region36
        $region35: #{tpu_custom_call.1} parent=31 // pred_region
          %198 = dma.done %s190, 128
        $region36: #{tpu_custom_call.1} parent=31 // pred_fallthru
          _
        // Predicated region
        $region37: #{tpu_custom_call.1} parent=31 // pred_check
          %p199 = pneg %p98
        $region38: #{tpu_custom_call.1} parent=31 // pred_check_branch
          %201 = sbr.rel (%p199) target = $region40
        $region39: #{tpu_custom_call.1} parent=31 // pred_region
          %203 = dma.done [#allocation6], 256
        $region40: #{tpu_custom_call.1} parent=31 // pred_fallthru
          _
        %s204 = sand.u32 %s43, 1
        %s205 = scalar_lea.sflag [#allocation3], %s204
        %s206 = sand.u32 %s43, 1
        %s207 = smul.addr %s206, 8
        %s208 = scalar_lea.vmem [#allocation2], %s207
        %p209 = pneg %p56
        %p210 = pneg %p53
        %p211 = pneg %p77
        %p212 = pneg %p74
        %p213 = pneg %p98
        %p214 = pneg %p95
        %p215 = pneg %p126
        %p216 = pneg %p123
        %s217 = sand.u32 %s113, 1
        %s218 = scalar_lea.sflag [#allocation4], %s217
        %s219 = sand.u32 %s113, 1
        %s220 = smul.addr %s219, 16
        %s221 = scalar_lea.vmem [#allocation7], %s220
        %s222 = smul.u32 2, %s26
        %s223 = smul.u32 2, %s26
        %v224 = vld [vmem:[%s1] sm:$0xff]
        %v225 = vld [vmem:[%s193] sm:$0xff]
        %v226 = vld [vmem:[#allocation5] sm:$0xff]
        %v227 = vld [vmem:[#allocation5 + $0x8] sm:$0xff]
        %229 = vst [vmem:[#allocation1] ss:$2 sm:$0xff] %v225
        %v230 = vld.sshfl [vmem:[#allocation1] sm:$0xff pattern:$0x75316420]
        %v231 = vld.sshfl [vmem:[#allocation1 + $0x8] sm:$0xff pattern:$0x75316420]
        %vm232 = vcmask 31744
        %v234 = vsel %vm232, %v224, 0
        %vm236 = vcmask 1043456
        %v237 = vsel %vm236, %v230, 0
        %v239 = vsel %vm236, %v231, 0
        %241 = vmatpush.msra.mxu0 0.0
        %242 = vmatpush.msra.mxu0 0.0
        %243 = vmatpush.msra.mxu0 0.0
        %244 = vmatpush.msra.mxu0 0.0
        %245 = vmatpush.msra.mxu0 0.0
        %246 = vmatpush.msra.mxu0 0.0
        %247 = vmatpush.msra.mxu0 0.0
        %248 = vmatpush.msra.mxu0 0.0
        %249 = vmatpush.msra.mxu0 0.0
        %250 = vmatpush.msra.mxu0 0.0
        %251 = vmatpush.msra.mxu0 0.0
        %252 = vmatpush.msra.mxu0 0.0
        %253 = vmatpush.msra.mxu0 0.0
        %254 = vmatpush.msra.mxu0 0.0
        %255 = vmatpush.msra.mxu0 0.0
        %256 = vmatpush.msra.mxu0 %v237
        %257 = vmatmul.f32.gmra.mxu0 %v234
        %v258 = vpop.f32.mrf.mxu0
        %v259 = vadd.f32 %v226, %v258
        %260 = vdwg.mxu0
        %261 = vmatpush.msra.mxu0 0.0
        %262 = vmatpush.msra.mxu0 0.0
        %263 = vmatpush.msra.mxu0 0.0
        %264 = vmatpush.msra.mxu0 0.0
        %265 = vmatpush.msra.mxu0 0.0
        %266 = vmatpush.msra.mxu0 0.0
        %267 = vmatpush.msra.mxu0 0.0
        %268 = vmatpush.msra.mxu0 0.0
        %269 = vmatpush.msra.mxu0 0.0
        %270 = vmatpush.msra.mxu0 0.0
        %271 = vmatpush.msra.mxu0 0.0
        %272 = vmatpush.msra.mxu0 0.0
        %273 = vmatpush.msra.mxu0 0.0
        %274 = vmatpush.msra.mxu0 0.0
        %275 = vmatpush.msra.mxu0 0.0
        %276 = vmatpush.msra.mxu0 %v239
        %277 = vmatmul.f32.gmra.mxu0 %v234
        %v278 = vpop.f32.mrf.mxu0
        %v279 = vadd.f32 %v227, %v278
        %280 = vdwg.mxu0
        %281 = vst [vmem:[%s221] sm:$0xff] %v259
        %282 = vst [vmem:[%s221 + $0x8] sm:$0xff] %v279
        %s283 = sand.u32 %s113, 1
        %s284 = scalar_lea.sflag [#allocation4], %s283
        %s285 = sand.u32 %s113, 1
        %s286 = smul.addr %s285, 16
        %s287 = scalar_lea.vmem [#allocation7], %s286
        // Predicated region
        $region41: #{tpu_custom_call.1} parent=31 // pred_check
          %p288 = pneg %p123
        $region42: #{tpu_custom_call.1} parent=31 // pred_check_branch
          %290 = sbr.rel (%p288) target = $region44
        $region43: #{tpu_custom_call.1} parent=31 // pred_region
          %s291 = smul.u32 2, %s26
          %293 = vsyncadd %s284, 0
          %s294 = smul.addr %s25, 4
          %s295 = sadd.s32 %s291, %s294
          %s296 = smul.addr %s295, 8
          %s297 = scalar_lea.hbm %s3, %s296
          %s299 = sshll.u32 %s287, 4
          %s300 = int_to_ptr.vmem [resolvable:$true] %s299
          %s301 = sshll.u32 %s297, 4
          %s302 = int_to_ptr.hbm [resolvable:$true] %s301
          %304 = dma.vmem_to_hbm [thread:$0]  %s300, 256, %s302, %s284
        $region44: #{tpu_custom_call.1} parent=31 // pred_fallthru
          _
      $region32: #{tpu_custom_call.1} parent=5 // pred_fallthru
        _
      %p305 = scmp.le.s32.totalorder 2, %s16
      // Predicated region
      $region45: #{tpu_custom_call.1} parent=5 // pred_check
        %p306 = pneg %p305
      $region46: #{tpu_custom_call.1} parent=5 // pred_check_branch
        %308 = sbr.rel (%p306) target = $region48
      $region47: #{tpu_custom_call.1} parent=5 // pred_region
        %s309 = ssub.s32 %s16, 2
        // Predicated region
        $region49: #{tpu_custom_call.1} parent=47 // pred_check
          %p310 = pneg %p129
        $region50: #{tpu_custom_call.1} parent=47 // pred_check_branch
          %312 = sbr.rel (%p310) target = $region52
        $region51: #{tpu_custom_call.1} parent=47 // pred_region
          %s313 = sand.u32 %s114, 1
          %s314 = scalar_lea.sflag [#allocation4], %s313
          %s315 = sand.u32 %s114, 1
          %s316 = smul.addr %s315, 16
          %s317 = scalar_lea.vmem [#allocation7], %s316
          %319 = dma.done %s314, 256
        $region52: #{tpu_custom_call.1} parent=47 // pred_fallthru
          _
      $region48: #{tpu_custom_call.1} parent=5 // pred_fallthru
        _
    $region6: #{tpu_custom_call.1} parent=1 // loop_footer
      %s20 = sadd.s32 1, %s16
    $region7: #{tpu_custom_call.1} parent=1 // loop_footer_branch
      %15 = sbr.rel target = $region3
    $region8: #{tpu_custom_call.1} parent=1 // loop_exit
      _
    %320 = vsyncpa [#allocation3], 1
    %s321 = scalar_lea.sflag [#allocation3], 1
    %322 = vsyncpa %s321, 1
    %323 = vsyncpa [#allocation6], 1
    %324 = vsyncpa [#allocation4], 1
    %s325 = scalar_lea.sflag [#allocation4], 1
    %326 = vsyncpa %s325, 1

</llo_original>
